<compile_context>
chip_gen: v7x
topology: tpu7x:2x2x1
jax: 0.10.0
libtpu: 0.0.40
codegen_flags: <defaults>
</compile_context>

<pallas_src>
import jax
import jax.numpy as jnp
from jax import lax
from jax.experimental import pallas as pl
from jax.experimental.pallas import tpu as pltpu

BN_EPS = 1e-5


def _make_conv_relu_stats_kernel(S, TS):
    """Pass 1: y = relu(w @ x_tile); per-tile per-channel sum / sumsq."""
    need_mask = (S % TS) != 0

    def kernel(x_ref, w_ref, y_ref, sum_ref, sq_ref):
        # x_ref:   (1, Cin, TS)        w_ref: (Cout, Cin)
        # y_ref:   (1, Cout, TS)
        # sum_ref: (1, 1, Cout, 1)     sq_ref: (1, 1, Cout, 1)
        xb = x_ref[0]                                   # (Cin, TS), native dtype
        w = w_ref[...]                                  # (Cout, Cin)
        y = jnp.dot(w, xb, preferred_element_type=jnp.float32)   # MXU, (Cout, TS)
        y = jnp.maximum(y, 0.0)                         # ReLU
        y_ref[0] = y.astype(y_ref.dtype)

        if need_mask:
            # The last spatial tile may run past S: keep its out-of-bounds
            # lanes out of the batch statistics.
            col = lax.broadcasted_iota(jnp.int32, y.shape, dimension=1)
            valid = (pl.program_id(1) * TS + col) < S
            y = jnp.where(valid, y, 0.0)

        sum_ref[0, 0] = jnp.sum(y, axis=1, keepdims=True)        # (Cout, 1)
        sq_ref[0, 0] = jnp.sum(y * y, axis=1, keepdims=True)     # (Cout, 1)

    return kernel


def _normalize_kernel(y_ref, scale_ref, shift_ref, o_ref):
    """Pass 2: out = y * scale + shift (per channel)."""
    yb = y_ref[0].astype(jnp.float32)                  # (Cout, TS)
    o_ref[0] = (yb * scale_ref[...] + shift_ref[...]).astype(o_ref.dtype)


def conv1_bn_relu(x, weight, gamma, beta, stride=1, *, spatial_tile=1024):
    """x: (N, Cin, H, W) NCHW.  weight: (Cout, Cin, 1, 1).  Returns NCHW."""
    N, Cin, H, W = x.shape
    Cout = weight.shape[0]

    # TODO(synk): for stride > 1 the subsampling is an XLA strided slice
    # before the kernel (touches only 1/stride^2 of x); folding it into the
    # BlockSpec would need strided lane loads.  stride == 1 is a no-op.
    xs = x if stride == 1 else x[:, :, ::stride, ::stride]
    Ho, Wo = xs.shape[2], xs.shape[3]
    S = Ho * Wo

    # Spatial tile: full extent if small, otherwise a lane-aligned tile.
    TS = S if S <= spatial_tile else spatial_tile
    assert TS == S or TS % 128 == 0, "spatial_tile must be a multiple of 128"
    s_tiles = pl.cdiv(S, TS)

    x3 = xs.reshape(N, Cin, S)                       # contiguous reshape: free
    w2 = weight.reshape(Cout, Cin).astype(x.dtype)   # (Cout, Cin)

    itemsize = jnp.dtype(x.dtype).itemsize
    parallel = pltpu.CompilerParams(
        dimension_semantics=("parallel", "parallel"))

    # ---- pass 1: conv + ReLU + partial statistics ---------------------------
    cost1 = pl.CostEstimate(
        flops=2 * N * S * Cin * Cout,
        transcendentals=0,
        bytes_accessed=(N * Cin * S + Cout * Cin + N * Cout * S) * itemsize
        + 2 * N * s_tiles * Cout * 4,
    )
    y, psum, psq = pl.pallas_call(
        _make_conv_relu_stats_kernel(S, TS),
        grid=(N, s_tiles),
        in_specs=[
            pl.BlockSpec((1, Cin, TS), lambda n, s: (n, 0, s)),
            pl.BlockSpec((Cout, Cin), lambda n, s: (0, 0)),
        ],
        out_specs=(
            pl.BlockSpec((1, Cout, TS), lambda n, s: (n, 0, s)),
            pl.BlockSpec((1, 1, Cout, 1), lambda n, s: (n, s, 0, 0)),
            pl.BlockSpec((1, 1, Cout, 1), lambda n, s: (n, s, 0, 0)),
        ),
        out_shape=(
            jax.ShapeDtypeStruct((N, Cout, S), x.dtype),
            jax.ShapeDtypeStruct((N, s_tiles, Cout, 1), jnp.float32),
            jax.ShapeDtypeStruct((N, s_tiles, Cout, 1), jnp.float32),
        ),
        compiler_params=parallel,
        cost_estimate=cost1,
    )(x3, w2)

    # ---- tiny per-channel glue (plain JAX): finalize BN statistics ----------
    count = jnp.asarray(N * S, jnp.float32)
    mean = jnp.sum(psum, axis=(0, 1)) / count                          # (Cout, 1)
    var = jnp.maximum(jnp.sum(psq, axis=(0, 1)) / count - mean * mean, 0.0)
    inv_std = lax.rsqrt(var + BN_EPS)
    scale = gamma.astype(jnp.float32).reshape(Cout, 1) * inv_std       # (Cout, 1)
    shift = beta.astype(jnp.float32).reshape(Cout, 1) - mean * scale   # (Cout, 1)

    # ---- pass 2: normalize ---------------------------------------------------
    cost2 = pl.CostEstimate(
        flops=2 * N * S * Cout,
        transcendentals=0,
        bytes_accessed=2 * N * Cout * S * itemsize + 2 * Cout * 4,
    )
    out3 = pl.pallas_call(
        _normalize_kernel,
        grid=(N, s_tiles),
        in_specs=[
            pl.BlockSpec((1, Cout, TS), lambda n, s: (n, 0, s)),
            pl.BlockSpec((Cout, 1), lambda n, s: (0, 0)),
            pl.BlockSpec((Cout, 1), lambda n, s: (0, 0)),
        ],
        out_specs=pl.BlockSpec((1, Cout, TS), lambda n, s: (n, 0, s)),
        out_shape=jax.ShapeDtypeStruct((N, Cout, S), x.dtype),
        compiler_params=parallel,
        cost_estimate=cost2,
    )(y, scale, shift)

    return out3.reshape(N, Cout, Ho, Wo)                # free reshape


if __name__ == "__main__":
    # Small shapes consistent with the module: N=2, Cin=4, Cout=8, H=W=16.
    N, Cin, Cout, H, W = 2, 4, 8, 16, 16
    stride = 2  # exercise the stride path of conv1x1

    key = jax.random.PRNGKey(0)
    kx, kw = jax.random.split(key)
    x = jax.random.normal(kx, (N, Cin, H, W), dtype=jnp.float32)
    # Conv2d weight (Cout, Cin, 1, 1), bias=False; deterministic init.
    weight = jax.random.normal(kw, (Cout, Cin, 1, 1), dtype=jnp.float32) * (
        1.0 / jnp.sqrt(Cin)
    )
    # BatchNorm2d affine params at PyTorch defaults.
    gamma = jnp.ones((Cout,), dtype=jnp.float32)
    beta = jnp.zeros((Cout,), dtype=jnp.float32)

    out = conv1_bn_relu(x, weight, gamma, beta, stride=stride)
    jax.block_until_ready(out)

    # Pure-JAX reference with the same training-mode BN semantics.
    xs = x[:, :, ::stride, ::stride]
    yref = jnp.einsum("oc,nchw->nohw", weight.reshape(Cout, Cin), xs)
    yref = jnp.maximum(yref, 0.0)
    m = yref.mean(axis=(0, 2, 3), keepdims=True)
    v = ((yref - m) ** 2).mean(axis=(0, 2, 3), keepdims=True)
    ref = (yref - m) * lax.rsqrt(v + BN_EPS) * gamma.reshape(1, Cout, 1, 1) \
        + beta.reshape(1, Cout, 1, 1)

    assert out.shape == (N, Cout, H // stride, W // stride), out.shape
    assert jnp.all(jnp.isfinite(out))
    assert jnp.allclose(out, ref, atol=1e-2, rtol=1e-2), float(
        jnp.max(jnp.abs(out - ref)))
    print("KERNEL_OK")
</pallas_src>

<mosaic_0001>
module attributes {stable_mosaic.version = 11 : i64} {
  func.func @kernel(%arg0: i32, %arg1: i32, %arg2: memref<1x4x64xf32, #tpu.memory_space<vmem>>, %arg3: memref<8x4xf32, #tpu.memory_space<vmem>>, %arg4: memref<1x8x64xf32, #tpu.memory_space<vmem>>, %arg5: memref<1x1x8x1xf32, #tpu.memory_space<vmem>>, %arg6: memref<1x1x8x1xf32, #tpu.memory_space<vmem>>) attributes {dimension_semantics = [#tpu.dimension_semantics<parallel>, #tpu.dimension_semantics<parallel>], iteration_bounds = array<i64: 2, 1>, scalar_prefetch = 0 : i64, scratch_operands = 0 : i64, tpu.core_type = #tpu.core_type<tc>, window_params = [{transform_indices = @transform_0, window_bounds = array<i64: 1, 4, 64>}, {pipeline_mode = #tpu.pipeline_mode<synchronous>, transform_indices = @transform_1, window_bounds = array<i64: 8, 4>}, {transform_indices = @transform_2, window_bounds = array<i64: 1, 8, 64>}, {transform_indices = @transform_3, window_bounds = array<i64: 1, 1, 8, 1>}, {transform_indices = @transform_4, window_bounds = array<i64: 1, 1, 8, 1>}]} {
    %c0 = arith.constant 0 : index
    %c0_0 = arith.constant 0 : index
    %c0_1 = arith.constant 0 : index
    %0 = vector.load %arg2[%c0, %c0_0, %c0_1] : memref<1x4x64xf32, #tpu.memory_space<vmem>>, vector<1x4x64xf32>
    %1 = vector.shape_cast %0 : vector<1x4x64xf32> to vector<4x64xf32>
    %c0_2 = arith.constant 0 : index
    %c0_3 = arith.constant 0 : index
    %2 = vector.load %arg3[%c0_2, %c0_3] : memref<8x4xf32, #tpu.memory_space<vmem>>, vector<8x4xf32>
    %cst = arith.constant dense<0.000000e+00> : vector<8x64xf32>
    %3 = tpu.matmul %2, %1, %cst {dimension_numbers = #tpu.dot_dimension_numbers<[1], [0], [0], [1], [0, 0, 1, 1], [], []>} : vector<8x4xf32>, vector<4x64xf32>, vector<8x64xf32> -> vector<8x64xf32>
    %cst_4 = arith.constant 0.000000e+00 : f32
    %4 = vector.broadcast %cst_4 : f32 to vector<8x64xf32>
    %5 = arith.maximumf %3, %4 : vector<8x64xf32>
    %c0_5 = arith.constant 0 : index
    %c0_6 = arith.constant 0 : index
    %c0_7 = arith.constant 0 : index
    %6 = vector.load %arg4[%c0_5, %c0_6, %c0_7] : memref<1x8x64xf32, #tpu.memory_space<vmem>>, vector<1x8x64xf32>
    %7 = vector.shape_cast %6 : vector<1x8x64xf32> to vector<8x64xf32>
    %8 = vector.shape_cast %5 : vector<8x64xf32> to vector<1x8x64xf32>
    tpu.vector_store %arg4[%c0_5, %c0_6, %c0_7], %8 {strides = array<i32>} : memref<1x8x64xf32, #tpu.memory_space<vmem>>, vector<1x8x64xf32>,
    %cst_8 = arith.constant dense<0.000000e+00> : vector<8xf32>
    %9 = vector.multi_reduction <add>, %5, %cst_8 [1] : vector<8x64xf32> to vector<8xf32>
    %10 = vector.shape_cast %9 : vector<8xf32> to vector<8x1xf32>
    %c0_9 = arith.constant 0 : index
    %c0_10 = arith.constant 0 : index
    %c0_11 = arith.constant 0 : index
    %c0_12 = arith.constant 0 : index
    %11 = vector.load %arg5[%c0_9, %c0_10, %c0_11, %c0_12] : memref<1x1x8x1xf32, #tpu.memory_space<vmem>>, vector<1x1x8x1xf32>
    %12 = vector.shape_cast %11 : vector<1x1x8x1xf32> to vector<8x1xf32>
    %13 = vector.shape_cast %10 : vector<8x1xf32> to vector<1x1x8x1xf32>
    tpu.vector_store %arg5[%c0_9, %c0_10, %c0_11, %c0_12], %13 {strides = array<i32>} : memref<1x1x8x1xf32, #tpu.memory_space<vmem>>, vector<1x1x8x1xf32>,
    %14 = arith.mulf %5, %5 : vector<8x64xf32>
    %cst_13 = arith.constant dense<0.000000e+00> : vector<8xf32>
    %15 = vector.multi_reduction <add>, %14, %cst_13 [1] : vector<8x64xf32> to vector<8xf32>
    %16 = vector.shape_cast %15 : vector<8xf32> to vector<8x1xf32>
    %c0_14 = arith.constant 0 : index
    %c0_15 = arith.constant 0 : index
    %c0_16 = arith.constant 0 : index
    %c0_17 = arith.constant 0 : index
    %17 = vector.load %arg6[%c0_14, %c0_15, %c0_16, %c0_17] : memref<1x1x8x1xf32, #tpu.memory_space<vmem>>, vector<1x1x8x1xf32>
    %18 = vector.shape_cast %17 : vector<1x1x8x1xf32> to vector<8x1xf32>
    %19 = vector.shape_cast %16 : vector<8x1xf32> to vector<1x1x8x1xf32>
    tpu.vector_store %arg6[%c0_14, %c0_15, %c0_16, %c0_17], %19 {strides = array<i32>} : memref<1x1x8x1xf32, #tpu.memory_space<vmem>>, vector<1x1x8x1xf32>,
    return
  }
  func.func @transform_0(%arg0: i32, %arg1: i32) -> (i32, i32, i32) {
    %c0_i32 = arith.constant 0 : i32
    %c0_i32_0 = arith.constant 0 : i32
    return %arg0, %c0_i32, %arg1 : i32, i32, i32
  }
  func.func @transform_1(%arg0: i32, %arg1: i32) -> (i32, i32) {
    %c0_i32 = arith.constant 0 : i32
    %c0_i32_0 = arith.constant 0 : i32
    %c0_i32_1 = arith.constant 0 : i32
    return %c0_i32, %c0_i32_0 : i32, i32
  }
  func.func @transform_2(%arg0: i32, %arg1: i32) -> (i32, i32, i32) {
    %c0_i32 = arith.constant 0 : i32
    %c0_i32_0 = arith.constant 0 : i32
    return %arg0, %c0_i32, %arg1 : i32, i32, i32
  }
  func.func @transform_3(%arg0: i32, %arg1: i32) -> (i32, i32, i32, i32) {
    %c0_i32 = arith.constant 0 : i32
    %c0_i32_0 = arith.constant 0 : i32
    %c0_i32_1 = arith.constant 0 : i32
    return %arg0, %arg1, %c0_i32, %c0_i32_0 : i32, i32, i32, i32
  }
  func.func @transform_4(%arg0: i32, %arg1: i32) -> (i32, i32, i32, i32) {
    %c0_i32 = arith.constant 0 : i32
    %c0_i32_0 = arith.constant 0 : i32
    %c0_i32_1 = arith.constant 0 : i32
    return %arg0, %arg1, %c0_i32, %c0_i32_0 : i32, i32, i32, i32
  }
}

</mosaic_0001>

<llo_original>
// kernel: tpu_custom_call.1
$region0: #{tpu_custom_call.1}
  #allocation0 [shape = 'u32[]', space=smem, size = 0x4, offset = 0x4, fixed_abs, tag = 'smem constant byte address 0x4 - core index']
  #allocation1 [shape = 'u32[144,128]{1,0:T(1,128)}', space=vmem, size = 0x12000, scoped, tag = 'internal scratch']
  %s0 = inlined_call_operand.vmem [shape: f32[2,4,64], index: 0, kind: input, shape index: {}]
  %s1 = inlined_call_operand.vmem [shape: f32[8,4], index: 1, kind: input, shape index: {}]
  %s2 = inlined_call_operand.hbm [shape: f32[2,8,64], index: 2, kind: output, shape index: {0}]
  %s3 = inlined_call_operand.vmem [shape: f32[2,1,8,1], index: 3, kind: output, shape index: {1}]
  %s4 = inlined_call_operand.vmem [shape: f32[2,1,8,1], index: 4, kind: output, shape index: {2}]
  %5 = xla_tuple %s2, %s3, %s4
  %s6 = sld [smem:[#allocation0]]
  $region57: #{tpu_custom_call.1} parent=0
    _
  %s8 = ssub.s32 1, %s6
  %s9 = scalar_select 0, %s8, %s6
  $region1: #{tpu_custom_call.1} parent=0
    #allocation2 [shape = 'u8[8192]{0}', space=vmem, size = 0x2000, scoped, tag = 'output window, operand 0']
    #allocation3 [shape = 's32[2]{0}', space=sflag, size = 0x8, scoped, tag = 'scoped memory for tpu_custom_call.1']
    %10 = vsyncpa [#allocation3], 0
    %s11 = scalar_lea.sflag [#allocation3], 1
    %12 = vsyncpa %s11, 0
    loop: start=0, step=1, limit=4
    $region2: #{tpu_custom_call.1} parent=1 // loop_pre_header
      _
    $region3: #{tpu_custom_call.1} parent=1 // loop_header
      %s14 = sphi 0, %s18
      %p15 = scmp.ge.s32.totalorder %s14, 4
      %s21 = sphi 0, %s33
      %s22 = sphi 0, %s29
      %s23 = sphi 0, %s21
      %s24 = sphi 0, %s22
      %s25 = sphi 0, %s23
      %s26 = sphi 0, %s24
      %s38 = sphi 0, %s40
      %s41 = sphi 0, %s38
      %s42 = sphi 0, %s41
      %s58 = sphi 0, %s42
      %s62 = sphi 0, %s62
      %s64 = sphi 0, %s62
      %s65 = sphi 0, %s64
      %s79 = sphi 0, %s65
      %s87 = sphi 0, %s89
      %s90 = sphi 0, %s87
      %s91 = sphi 0, %s90
      %s107 = sphi 0, %s91
      %s115 = sphi 0, %s117
      %s118 = sphi 0, %s115
      %s119 = sphi 0, %s118
      %s135 = sphi 0, %s119
      %s143 = sphi 0, %s145
      %s146 = sphi 0, %s143
      %s147 = sphi 0, %s146
      %s163 = sphi 0, %s147
    $region4: #{tpu_custom_call.1} parent=1 // loop_header_branch
      %17 = sbr.rel (%p15) target = $region8
    $region5: #{tpu_custom_call.1} parent=1 // loop_body
      %s19 = ssub.s32 %s14, 1
      %s20 = ssub.s32 %s14, 2
      %s27 = sadd.s32 1, %s22
      %p28 = scmp.ge.s32.totalorder %s27, 1
      %s29 = scalar_select %p28, 0, %s27
      %s30 = sadd.s32 1, %s21
      %s31 = scalar_select %p28, %s30, %s21
      %p32 = scmp.ge.s32.totalorder %s31, 2
      %s33 = scalar_select %p32, 0, %s31
      %s34 = ssub.s32 %s21, %s33
      %s35 = ssub.s32 %s22, %s29
      %s36 = sor.u32 %s34, %s35
      %p37 = scmp.eq.s32.totalorder %s36, 0
      %s39 = sadd.s32 %s38, 1
      %s40 = scalar_select %p37, %s38, %s39
      %p43 = pneg %p37
      %p44 = scmp.eq.s32.totalorder %s14, 1
      %p45 = por %p43, %p44
      %p46 = scmp.ne.s32.totalorder %s38, %s41
      %p47 = scmp.eq.s32.totalorder %s14, 0
      %p48 = por %p46, %p47
      %p49 = scmp.ne.s32.totalorder %s38, %s41
      %p50 = scmp.eq.s32.totalorder %s19, 1
      %p51 = por %p49, %p50
      %p52 = scmp.ne.s32.totalorder %s41, %s42
      %p53 = scmp.eq.s32.totalorder %s19, 0
      %p54 = por %p52, %p53
      %p55 = scmp.ne.s32.totalorder %s41, %s42
      %p56 = scmp.eq.s32.totalorder %s20, 1
      %p57 = por %p55, %p56
      %p59 = scmp.ne.s32.totalorder %s42, %s58
      %p60 = scmp.eq.s32.totalorder %s20, 0
      %p61 = por %p59, %p60
      %s63 = sadd.s32 %s62, 1
      %p66 = scmp.eq.s32.totalorder %s14, 1
      %p67 = scmp.ne.s32.totalorder %s62, %s64
      %p68 = scmp.eq.s32.totalorder %s14, 0
      %p69 = por %p67, %p68
      %p70 = scmp.ne.s32.totalorder %s62, %s64
      %p71 = scmp.eq.s32.totalorder %s19, 1
      %p72 = por %p70, %p71
      %p73 = scmp.ne.s32.totalorder %s64, %s65
      %p74 = scmp.eq.s32.totalorder %s19, 0
      %p75 = por %p73, %p74
      %p76 = scmp.ne.s32.totalorder %s64, %s65
      %p77 = scmp.eq.s32.totalorder %s20, 1
      %p78 = por %p76, %p77
      %p80 = scmp.ne.s32.totalorder %s65, %s79
      %p81 = scmp.eq.s32.totalorder %s20, 0
      %p82 = por %p80, %p81
      %s83 = ssub.s32 %s21, %s33
      %s84 = ssub.s32 %s22, %s29
      %s85 = sor.u32 %s83, %s84
      %p86 = scmp.eq.s32.totalorder %s85, 0
      %s88 = sadd.s32 %s87, 1
      %s89 = scalar_select %p86, %s87, %s88
      %p92 = pneg %p86
      %p93 = scmp.eq.s32.totalorder %s14, 1
      %p94 = por %p92, %p93
      %p95 = scmp.ne.s32.totalorder %s87, %s90
      %p96 = scmp.eq.s32.totalorder %s14, 0
      %p97 = por %p95, %p96
      %p98 = scmp.ne.s32.totalorder %s87, %s90
      %p99 = scmp.eq.s32.totalorder %s19, 1
      %p100 = por %p98, %p99
      %p101 = scmp.ne.s32.totalorder %s90, %s91
      %p102 = scmp.eq.s32.totalorder %s19, 0
      %p103 = por %p101, %p102
      %p104 = scmp.ne.s32.totalorder %s90, %s91
      %p105 = scmp.eq.s32.totalorder %s20, 1
      %p106 = por %p104, %p105
      %p108 = scmp.ne.s32.totalorder %s91, %s107
      %p109 = scmp.eq.s32.totalorder %s20, 0
      %p110 = por %p108, %p109
      %s111 = ssub.s32 %s21, %s33
      %s112 = ssub.s32 %s22, %s29
      %s113 = sor.u32 %s111, %s112
      %p114 = scmp.eq.s32.totalorder %s113, 0
      %s116 = sadd.s32 %s115, 1
      %s117 = scalar_select %p114, %s115, %s116
      %p120 = pneg %p114
      %p121 = scmp.eq.s32.totalorder %s14, 1
      %p122 = por %p120, %p121
      %p123 = scmp.ne.s32.totalorder %s115, %s118
      %p124 = scmp.eq.s32.totalorder %s14, 0
      %p125 = por %p123, %p124
      %p126 = scmp.ne.s32.totalorder %s115, %s118
      %p127 = scmp.eq.s32.totalorder %s19, 1
      %p128 = por %p126, %p127
      %p129 = scmp.ne.s32.totalorder %s118, %s119
      %p130 = scmp.eq.s32.totalorder %s19, 0
      %p131 = por %p129, %p130
      %p132 = scmp.ne.s32.totalorder %s118, %s119
      %p133 = scmp.eq.s32.totalorder %s20, 1
      %p134 = por %p132, %p133
      %p136 = scmp.ne.s32.totalorder %s119, %s135
      %p137 = scmp.eq.s32.totalorder %s20, 0
      %p138 = por %p136, %p137
      %s139 = ssub.s32 %s21, %s33
      %s140 = ssub.s32 %s22, %s29
      %s141 = sor.u32 %s139, %s140
      %p142 = scmp.eq.s32.totalorder %s141, 0
      %s144 = sadd.s32 %s143, 1
      %s145 = scalar_select %p142, %s143, %s144
      %p148 = pneg %p142
      %p149 = scmp.eq.s32.totalorder %s14, 1
      %p150 = por %p148, %p149
      %p151 = scmp.ne.s32.totalorder %s143, %s146
      %p152 = scmp.eq.s32.totalorder %s14, 0
      %p153 = por %p151, %p152
      %p154 = scmp.ne.s32.totalorder %s143, %s146
      %p155 = scmp.eq.s32.totalorder %s19, 1
      %p156 = por %p154, %p155
      %p157 = scmp.ne.s32.totalorder %s146, %s147
      %p158 = scmp.eq.s32.totalorder %s19, 0
      %p159 = por %p157, %p158
      %p160 = scmp.ne.s32.totalorder %s146, %s147
      %p161 = scmp.eq.s32.totalorder %s20, 1
      %p162 = por %p160, %p161
      %p164 = scmp.ne.s32.totalorder %s147, %s163
      %p165 = scmp.eq.s32.totalorder %s20, 0
      %p166 = por %p164, %p165
      %p167 = scmp.le.s32.totalorder 1, %s14
      %p168 = scmp.lt.s32.totalorder %s14, 3
      %p169 = pnand %p167, %p168
      %p170 = pneg %p169
      // Predicated region
      $region9: #{tpu_custom_call.1} parent=5 // pred_check
        _
      $region10: #{tpu_custom_call.1} parent=5 // pred_check_branch
        %172 = sbr.rel (%p169) target = $region12
      $region11: #{tpu_custom_call.1} parent=5 // pred_region
        %s173 = ssub.s32 %s14, 1
        // Predicated region
        $region13: #{tpu_custom_call.1} parent=11 // pred_check
          %p174 = pneg %p75
        $region14: #{tpu_custom_call.1} parent=11 // pred_check_branch
          %176 = sbr.rel (%p174) target = $region16
        $region15: #{tpu_custom_call.1} parent=11 // pred_region
          _
        $region16: #{tpu_custom_call.1} parent=11 // pred_fallthru
          _
      $region12: #{tpu_custom_call.1} parent=5 // pred_fallthru
        _
      %p177 = scmp.lt.s32.totalorder %s14, 2
      // Predicated region
      $region17: #{tpu_custom_call.1} parent=5 // pred_check
        %p178 = pneg %p177
      $region18: #{tpu_custom_call.1} parent=5 // pred_check_branch
        %180 = sbr.rel (%p178) target = $region20
      $region19: #{tpu_custom_call.1} parent=5 // pred_region
        // Predicated region
        $region21: #{tpu_custom_call.1} parent=19 // pred_check
          %p181 = pneg %p48
        $region22: #{tpu_custom_call.1} parent=19 // pred_check_branch
          %183 = sbr.rel (%p181) target = $region24
        $region23: #{tpu_custom_call.1} parent=19 // pred_region
          %p184 = scmp.lt.s32.totalorder %s21, 1
          %s185 = scalar_select %p184, %s21, 1
          %p186 = scmp.lt.s32.totalorder %s22, 0
          %s187 = scalar_select %p186, %s22, 0
          %s188 = sadd.s32 %s187, %s185
          %s189 = smul.addr %s188, 4
          %s190 = scalar_lea.vmem %s0, %s189
        $region24: #{tpu_custom_call.1} parent=19 // pred_fallthru
          _
      $region20: #{tpu_custom_call.1} parent=5 // pred_fallthru
        _
      %p191 = scmp.le.s32.totalorder 1, %s14
      %p192 = scmp.lt.s32.totalorder %s14, 3
      %p193 = pnand %p191, %p192
      %p194 = pneg %p193
      // Predicated region
      $region25: #{tpu_custom_call.1} parent=5 // pred_check
        _
      $region26: #{tpu_custom_call.1} parent=5 // pred_check_branch
        %196 = sbr.rel (%p193) target = $region28
      $region27: #{tpu_custom_call.1} parent=5 // pred_region
        %s197 = ssub.s32 %s14, 1
        %p198 = scmp.lt.s32.totalorder %s23, 1
        %s199 = scalar_select %p198, %s23, 1
        %p200 = scmp.lt.s32.totalorder %s24, 0
        %s201 = scalar_select %p200, %s24, 0
        %s202 = sadd.s32 %s201, %s199
        %s203 = smul.addr %s202, 4
        %s204 = scalar_lea.vmem %s0, %s203
        %p205 = pneg %p54
        %p206 = pneg %p51
        %p207 = pneg %p75
        %p208 = pneg %p72
        %p209 = pneg %p103
        %p210 = pneg %p100
        %s211 = sand.u32 %s90, 1
        %s212 = scalar_lea.sflag [#allocation3], %s211
        %s213 = sand.u32 %s90, 1
        %s214 = smul.addr %s213, 8
        %s215 = scalar_lea.vmem [#allocation2], %s214
        %p216 = pneg %p131
        %p217 = pneg %p128
        %p218 = scmp.lt.s32.totalorder %s23, 1
        %s219 = scalar_select %p218, %s23, 1
        %p220 = scmp.lt.s32.totalorder %s24, 0
        %s221 = scalar_select %p220, %s24, 0
        %s222 = sadd.s32 %s221, %s219
        %s223 = smul.addr %s222, 8
        %s224 = scalar_lea.vmem %s3, %s223
        %p225 = pneg %p159
        %p226 = pneg %p156
        %p227 = scmp.lt.s32.totalorder %s23, 1
        %s228 = scalar_select %p227, %s23, 1
        %p229 = scmp.lt.s32.totalorder %s24, 0
        %s230 = scalar_select %p229, %s24, 0
        %s231 = sadd.s32 %s230, %s228
        %s232 = smul.addr %s231, 8
        %s233 = scalar_lea.vmem %s4, %s232
        %p234 = scmp.lt.s32.totalorder %s23, 1
        %s235 = scalar_select %p234, %s23, 1
        %p236 = scmp.lt.s32.totalorder %s24, 0
        %s237 = scalar_select %p236, %s24, 0
        %s238 = sadd.s32 %s237, %s235
        %s239 = smul.addr %s238, 4
        %s240 = scalar_lea.vmem %s0, %s239
        %p241 = scmp.lt.s32.totalorder %s23, 1
        %s242 = scalar_select %p241, %s23, 1
        %p243 = scmp.lt.s32.totalorder %s24, 0
        %s244 = scalar_select %p243, %s24, 0
        %s245 = sadd.s32 %s244, %s242
        %s246 = smul.addr %s245, 8
        %s247 = scalar_lea.vmem %s3, %s246
        %p248 = scmp.lt.s32.totalorder %s23, 1
        %s249 = scalar_select %p248, %s23, 1
        %p250 = scmp.lt.s32.totalorder %s24, 0
        %s251 = scalar_select %p250, %s24, 0
        %s252 = sadd.s32 %s251, %s249
        %s253 = smul.addr %s252, 8
        %s254 = scalar_lea.vmem %s4, %s253
        %v255 = vld [vmem:[%s240] sm:$0xf]
        %v256 = vld [vmem:[%s1] sm:$0xff]
        %vm257 = vcmask 31744
        %v259 = vsel %vm257, %v256, 0
        %vm261 = vcmask 1043456
        %v263 = vsel %vm261, %v255, 0
        %265 = vmatprep.subr.mxu0 0.0
        %266 = vmatpush1.msra.mxu0 %v263
        %267 = vmatprep.subr.mxu0 0.0
        %268 = vmatpush1.msra.mxu0 0.0
        %269 = vmatprep.subr.mxu0 0.0
        %270 = vmatpush1.msra.mxu0 0.0
        %271 = vmatprep.subr.mxu0 0.0
        %272 = vmatpush1.msra.mxu0 0.0
        %273 = vmatprep.subr.mxu0 0.0
        %274 = vmatpush1.msra.mxu0 0.0
        %275 = vmatprep.subr.mxu0 0.0
        %276 = vmatpush1.msra.mxu0 0.0
        %277 = vmatprep.subr.mxu0 0.0
        %278 = vmatpush1.msra.mxu0 0.0
        %279 = vmatprep.subr.mxu0 0.0
        %280 = vmatpush1.msra.mxu0 0.0
        %281 = vmatprep.subr.mxu0 0.0
        %282 = vmatpush1.msra.mxu0 0.0
        %283 = vmatprep.subr.mxu0 0.0
        %284 = vmatpush1.msra.mxu0 0.0
        %285 = vmatprep.subr.mxu0 0.0
        %286 = vmatpush1.msra.mxu0 0.0
        %287 = vmatprep.subr.mxu0 0.0
        %288 = vmatpush1.msra.mxu0 0.0
        %289 = vmatprep.subr.mxu0 0.0
        %290 = vmatpush1.msra.mxu0 0.0
        %291 = vmatprep.subr.mxu0 0.0
        %292 = vmatpush1.msra.mxu0 0.0
        %293 = vmatprep.subr.mxu0 0.0
        %294 = vmatpush1.msra.mxu0 0.0
        %295 = vmatprep.subr.mxu0 0.0
        %296 = vmatpush1.msra.mxu0 0.0
        %297 = vmatprep.subr.mxu0 0.0
        %298 = vmatpush1.msra.mxu0 0.0
        %299 = vmatprep.subr.mxu0 0.0
        %300 = vmatpush1.msra.mxu0 0.0
        %301 = vmatprep.subr.mxu0 0.0
        %302 = vmatpush1.msra.mxu0 0.0
        %303 = vmatprep.subr.mxu0 0.0
        %304 = vmatpush1.msra.mxu0 0.0
        %305 = vmatprep.subr.mxu0 0.0
        %306 = vmatpush1.msra.mxu0 0.0
        %307 = vmatprep.subr.mxu0 0.0
        %308 = vmatpush1.msra.mxu0 0.0
        %309 = vmatprep.subr.mxu0 0.0
        %310 = vmatpush1.msra.mxu0 0.0
        %311 = vmatprep.subr.mxu0 0.0
        %312 = vmatpush1.msra.mxu0 0.0
        %313 = vmatprep.subr.mxu0 0.0
        %314 = vmatpush1.msra.mxu0 0.0
        %315 = vmatprep.subr.mxu0 0.0
        %316 = vmatpush1.msra.mxu0 0.0
        %317 = vmatprep.subr.mxu0 0.0
        %318 = vmatpush1.msra.mxu0 0.0
        %319 = vmatprep.subr.mxu0 0.0
        %320 = vmatpush1.msra.mxu0 0.0
        %321 = vmatprep.subr.mxu0 0.0
        %322 = vmatpush1.msra.mxu0 0.0
        %323 = vmatprep.subr.mxu0 0.0
        %324 = vmatpush1.msra.mxu0 0.0
        %325 = vmatprep.subr.mxu0 0.0
        %326 = vmatpush1.msra.mxu0 0.0
        %327 = vmatprep.subr.mxu0 0.0
        %328 = vmatpush1.msra.mxu0 0.0
        %329 = vmatprep.mubr.f32.mxu0 0.0
        %330 = vmatmul.mubr.f32.gmra.mrb[0].mxu0 %v259
        %v331 = vpop.f32.mrb[0].mxu0
        %v332 = vadd.f32 0.0, %v331
        %v333 = vpop.f32.mrb[0].mxu0
        %334 = vdwg.mxu0
        %v335 = vmax.f32 %v332, 0.0
        %vm336 = vcmask 523264
        %337 = vst.msk [vmem:[%s215] sm:$0xff] %vm336, %v335
        %v338 = vsel %vm336, %v335, 0.0
        %339 = vadd.xlane.f32.xlu0 %v338
        %v340 = vpop.xlane.xlu0 %339
        %vm341 = vcmask 7168
        %342 = vst.msk [vmem:[%s247] sm:$0xff] %vm341, %v340
        %v343 = vmul.f32 %v335, %v335
        %v344 = vsel %vm336, %v343, 0.0
        %345 = vadd.xlane.f32.xlu0 %v344
        %v346 = vpop.xlane.xlu0 %345
        %347 = vst.msk [vmem:[%s254] sm:$0xff] %vm341, %v346
        %s348 = sand.u32 %s90, 1
        %s349 = scalar_lea.sflag [#allocation3], %s348
        %s350 = sand.u32 %s90, 1
        %s351 = smul.addr %s350, 8
        %s352 = scalar_lea.vmem [#allocation2], %s351
        %p353 = scmp.lt.s32.totalorder %s23, 1
        %s354 = scalar_select %p353, %s23, 1
        %p355 = scmp.lt.s32.totalorder %s24, 0
        %s356 = scalar_select %p355, %s24, 0
        %s357 = sadd.s32 %s356, %s354
        %s358 = smul.addr %s357, 8
        %s359 = scalar_lea.vmem %s3, %s358
        %p360 = scmp.lt.s32.totalorder %s23, 1
        %s361 = scalar_select %p360, %s23, 1
        %p362 = scmp.lt.s32.totalorder %s24, 0
        %s363 = scalar_select %p362, %s24, 0
        %s364 = sadd.s32 %s363, %s361
        %s365 = smul.addr %s364, 8
        %s366 = scalar_lea.vmem %s4, %s365
        // Predicated region
        $region29: #{tpu_custom_call.1} parent=27 // pred_check
          %p367 = pneg %p100
        $region30: #{tpu_custom_call.1} parent=27 // pred_check_branch
          %369 = sbr.rel (%p367) target = $region32
        $region31: #{tpu_custom_call.1} parent=27 // pred_region
          %s371 = ssub.s32 128, 128
          %372 = vsyncadd %s349, %s371
          %s373 = sadd.s32 %s24, %s23
          %s374 = smul.addr %s373, 128
          %s375 = scalar_lea.hbm %s2, %s374
          %s377 = sshll.u32 %s352, 4
          %s378 = int_to_ptr.vmem [resolvable:$true] %s377
          %380 = dma.vmem_to_hbm [thread:$0]  %s378, 128, %s375, %s349
        $region32: #{tpu_custom_call.1} parent=27 // pred_fallthru
          _
        // Predicated region
        $region33: #{tpu_custom_call.1} parent=27 // pred_check
          %p381 = pneg %p128
        $region34: #{tpu_custom_call.1} parent=27 // pred_check_branch
          %383 = sbr.rel (%p381) target = $region36
        $region35: #{tpu_custom_call.1} parent=27 // pred_region
          _
        $region36: #{tpu_custom_call.1} parent=27 // pred_fallthru
          _
        // Predicated region
        $region37: #{tpu_custom_call.1} parent=27 // pred_check
          %p384 = pneg %p156
        $region38: #{tpu_custom_call.1} parent=27 // pred_check_branch
          %386 = sbr.rel (%p384) target = $region40
        $region39: #{tpu_custom_call.1} parent=27 // pred_region
          _
        $region40: #{tpu_custom_call.1} parent=27 // pred_fallthru
          _
      $region28: #{tpu_custom_call.1} parent=5 // pred_fallthru
        _
      %p387 = scmp.le.s32.totalorder 2, %s14
      // Predicated region
      $region41: #{tpu_custom_call.1} parent=5 // pred_check
        %p388 = pneg %p387
      $region42: #{tpu_custom_call.1} parent=5 // pred_check_branch
        %390 = sbr.rel (%p388) target = $region44
      $region43: #{tpu_custom_call.1} parent=5 // pred_region
        %s391 = ssub.s32 %s14, 2
        // Predicated region
        $region45: #{tpu_custom_call.1} parent=43 // pred_check
          %p392 = pneg %p106
        $region46: #{tpu_custom_call.1} parent=43 // pred_check_branch
          %394 = sbr.rel (%p392) target = $region48
        $region47: #{tpu_custom_call.1} parent=43 // pred_region
          %s395 = sand.u32 %s91, 1
          %s396 = scalar_lea.sflag [#allocation3], %s395
          %s397 = sand.u32 %s91, 1
          %s398 = smul.addr %s397, 8
          %s399 = scalar_lea.vmem [#allocation2], %s398
          %400 = dma.done %s396, 128
        $region48: #{tpu_custom_call.1} parent=43 // pred_fallthru
          _
        // Predicated region
        $region49: #{tpu_custom_call.1} parent=43 // pred_check
          %p401 = pneg %p134
        $region50: #{tpu_custom_call.1} parent=43 // pred_check_branch
          %403 = sbr.rel (%p401) target = $region52
        $region51: #{tpu_custom_call.1} parent=43 // pred_region
          %p404 = scmp.lt.s32.totalorder %s25, 1
          %s405 = scalar_select %p404, %s25, 1
          %p406 = scmp.lt.s32.totalorder %s26, 0
          %s407 = scalar_select %p406, %s26, 0
          %s408 = sadd.s32 %s407, %s405
          %s409 = smul.addr %s408, 8
          %s410 = scalar_lea.vmem %s3, %s409
        $region52: #{tpu_custom_call.1} parent=43 // pred_fallthru
          _
        // Predicated region
        $region53: #{tpu_custom_call.1} parent=43 // pred_check
          %p411 = pneg %p162
        $region54: #{tpu_custom_call.1} parent=43 // pred_check_branch
          %413 = sbr.rel (%p411) target = $region56
        $region55: #{tpu_custom_call.1} parent=43 // pred_region
          %p414 = scmp.lt.s32.totalorder %s25, 1
          %s415 = scalar_select %p414, %s25, 1
          %p416 = scmp.lt.s32.totalorder %s26, 0
          %s417 = scalar_select %p416, %s26, 0
          %s418 = sadd.s32 %s417, %s415
          %s419 = smul.addr %s418, 8
          %s420 = scalar_lea.vmem %s4, %s419
        $region56: #{tpu_custom_call.1} parent=43 // pred_fallthru
          _
      $region44: #{tpu_custom_call.1} parent=5 // pred_fallthru
        _
    $region6: #{tpu_custom_call.1} parent=1 // loop_footer
      %s18 = sadd.s32 1, %s14
    $region7: #{tpu_custom_call.1} parent=1 // loop_footer_branch
      %13 = sbr.rel target = $region3
    $region8: #{tpu_custom_call.1} parent=1 // loop_exit
      _
    %421 = vsyncpa [#allocation3], 1
    %s422 = scalar_lea.sflag [#allocation3], 1
    %423 = vsyncpa %s422, 1

</llo_original>
